<compile_context>
chip_gen: v7x
topology: tpu7x:2x2x1
jax: 0.10.0
libtpu: 0.0.40
codegen_flags: <defaults>
</compile_context>

<pallas_src>
import functools

import jax
import jax.numpy as jnp
from jax.experimental import pallas as pl
from jax.experimental.pallas import tpu as pltpu

_MIB = 1024 * 1024


# ----------------------------- kernels ------------------------------------ #

def _ffn_kernel_resident(x_ref, w1_ref, b1_ref, w2_ref, b2_ref, o_ref):
    # x_ref : (tm, E)  input dtype; w1_ref: (E, H) bf16 (resident);
    # b1_ref: (1, H) f32; w2_ref: (H, E) bf16 (resident); b2_ref: (1, E) f32.
    xb = x_ref[...].astype(jnp.bfloat16)              # in-kernel cast (VPU filler)
    h = jnp.dot(xb, w1_ref[...], preferred_element_type=jnp.float32)
    h = jnp.maximum(h + b1_ref[...], 0.0)             # bias + ReLU in f32
    y = jnp.dot(h.astype(w2_ref.dtype), w2_ref[...],
                preferred_element_type=jnp.float32)
    o_ref[...] = (y + b2_ref[...]).astype(o_ref.dtype)


def _ffn_kernel_htiled(x_ref, w1_ref, b1_ref, w2_ref, b2_ref, o_ref, acc_ref):
    # grid = (row_tiles, H//th); H axis last, "arbitrary"; acc_ref: (tm, E) f32.
    k = pl.program_id(1)

    @pl.when(k == 0)
    def _():
        acc_ref[...] = jnp.zeros_like(acc_ref)

    xb = x_ref[...].astype(jnp.bfloat16)
    h = jnp.dot(xb, w1_ref[...], preferred_element_type=jnp.float32)
    h = jnp.maximum(h + b1_ref[...], 0.0)
    acc_ref[...] += jnp.dot(h.astype(w2_ref.dtype), w2_ref[...],
                            preferred_element_type=jnp.float32)

    @pl.when(k == pl.num_programs(1) - 1)
    def _():
        o_ref[...] = (acc_ref[...] + b2_ref[...]).astype(o_ref.dtype)


# ----------------------------- helpers ------------------------------------ #

def _vmem_capacity_bytes():
    try:
        return int(pltpu.get_tpu_info().vmem_capacity_bytes)
    except Exception:
        return 64 * _MIB           # conservative fallback (v7x per-TensorCore)


def _pick_tm(m, e, vmem_cap):
    """Row tile: full-dim block for tiny M, else MXU-sized with an even tile
    count when possible (v7x megacore sharding)."""
    if m <= 128:
        return m                   # single full-dim block: always legal, no masking
    prefer = 512 if (vmem_cap >= 96 * _MIB and e <= 1024) else 256
    cands = [c for c in (512, 256, 128) if c <= prefer]
    for c in cands:                # prefer an even number of tiles (>= 2)
        n = -(-m // c)
        if n >= 2 and n % 2 == 0:
            return c
    for c in cands:
        if m >= c:
            return c
    return 128


def _pick_th(h):
    """Largest lane-aligned chunk that divides H exactly (reduction axis must
    partition H to keep the accumulator uncontaminated)."""
    for th in (2048, 1024, 512, 256, 128):
        if h % th == 0:
            return th
    return h


# ----------------------------- wrapper ------------------------------------ #

@functools.partial(jax.jit, static_argnames=("tm", "th", "force_htile",
                                             "single_buffer_weights"))
def feed_forward(x, w1, b1, w2, b2, *, tm=None, th=None, force_htile=False,
                 single_buffer_weights=True):
    """Fused Linear(E->4E) -> ReLU -> Linear(4E->E) -> Dropout.

    NOTE: dropout is evaluated in *inference* mode (identity), i.e. the PyTorch
    module under model.eval().  The hidden activation is downcast to bf16
    before the second matmul (f32 accumulation), which is bf16-MXU inference
    numerics rather than exact f32 parity.
    """
    *lead, E = x.shape
    H = w1.shape[1]                                  # 4 * E
    M = 1
    for d in lead:
        M *= d

    vmem_cap = _vmem_capacity_bytes()
    if tm is None:
        tm = _pick_tm(M, E, vmem_cap)
    n_tiles = pl.cdiv(M, tm)

    x2 = x.reshape(M, E)                             # no wrapper cast, no pad
    w1b = w1.astype(jnp.bfloat16)
    w2b = w2.astype(jnp.bfloat16)
    b1r = b1.reshape(1, H).astype(jnp.float32)
    b2r = b2.reshape(1, E).astype(jnp.float32)

    xb = jnp.dtype(x.dtype).itemsize
    ob = xb                                          # output echoes x.dtype

    # Resident-weight fast-path VMEM estimate (bf16 weights single-buffered).
    resident_est = (2 * tm * E * xb                  # x tiles (double-buffered)
                    + 2 * tm * E * ob                # out tiles (double-buffered)
                    + 2 * E * H * 2                  # W1 + W2 (bf16, resident)
                    + (H + E) * 4                    # biases (f32)
                    + tm * H * (4 + 2))              # h in f32 + bf16 recast
    use_htile = force_htile or (1.4 * resident_est + 2 * _MIB > 0.75 * vmem_cap)

    if not use_htile:
        vmem_est = resident_est
        w_spec = (functools.partial(pl.BlockSpec, pipeline_mode=pl.Buffered(1))
                  if single_buffer_weights else pl.BlockSpec)
        grid = (n_tiles,)
        in_specs = [
            pl.BlockSpec((tm, E), lambda i: (i, 0)),      # x row-tile
            w_spec((E, H), lambda i: (0, 0)),             # W1 (resident)
            w_spec((1, H), lambda i: (0, 0)),             # b1
            w_spec((H, E), lambda i: (0, 0)),             # W2 (resident)
            w_spec((1, E), lambda i: (0, 0)),             # b2
        ]
        out_specs = pl.BlockSpec((tm, E), lambda i: (i, 0))
        scratch = []
        kernel = _ffn_kernel_resident
        dim_sem = ("parallel",)
        weight_bytes = 2 * E * H * 2                      # loaded once
    else:
        if th is None:
            th = _pick_th(H)
        if H % th:
            raise ValueError("th must divide the hidden dim H (= 4*n_embd)")
        n_h = H // th
        vmem_est = (2 * tm * E * xb + 2 * tm * E * ob
                    + 2 * E * th * 2 + 2 * th * E * 2     # W1/W2 chunks (dbl-buf)
                    + 2 * th * 4 + E * 4                  # bias chunks
                    + tm * E * 4                          # f32 accumulator
                    + tm * th * (4 + 2))                  # h chunk f32 + bf16
        grid = (n_tiles, n_h)
        in_specs = [
            pl.BlockSpec((tm, E), lambda i, k: (i, 0)),   # x row-tile
            pl.BlockSpec((E, th), lambda i, k: (0, k)),   # W1 column chunk
            pl.BlockSpec((1, th), lambda i, k: (0, k)),   # b1 chunk
            pl.BlockSpec((th, E), lambda i, k: (k, 0)),   # W2 row chunk
            pl.BlockSpec((1, E), lambda i, k: (0, 0)),    # b2
        ]
        out_specs = pl.BlockSpec((tm, E), lambda i, k: (i, 0))
        scratch = [pltpu.VMEM((tm, E), jnp.float32)]
        kernel = _ffn_kernel_htiled
        dim_sem = ("parallel", "arbitrary")
        weight_bytes = n_tiles * 2 * E * H * 2            # re-streamed per row tile

    # Generation-aware VMEM budget: never request the full physical VMEM
    # (48 MiB cap on v7x's 64 MiB/TC, ~96 MiB on v5e/v6e's 128 MiB).
    vmem_bytes = int(min(max(1.4 * vmem_est + 2 * _MIB, 32 * _MIB),
                         int(0.75 * vmem_cap)))

    cost = pl.CostEstimate(
        flops=2 * 2 * M * E * H,
        transcendentals=0,
        bytes_accessed=int(M * E * (xb + ob) + weight_bytes + (H + E) * 4))

    out2 = pl.pallas_call(
        kernel,
        out_shape=jax.ShapeDtypeStruct((M, E), x.dtype),
        grid_spec=pltpu.PrefetchScalarGridSpec(
            num_scalar_prefetch=0,
            grid=grid,
            in_specs=in_specs,
            out_specs=out_specs,
            scratch_shapes=scratch),
        compiler_params=pltpu.CompilerParams(
            dimension_semantics=dim_sem,
            vmem_limit_bytes=vmem_bytes),
        cost_estimate=cost,
    )(x2, w1b, b1r, w2b, b2r)

    return out2.reshape(*lead, E)


def init_params(key, n_embd):
    """Deterministic parameter init (PyTorch-Linear-style uniform bounds)."""
    hidden = 4 * n_embd
    k1, k2, k3, k4 = jax.random.split(key, 4)
    bound1 = 1.0 / jnp.sqrt(n_embd)
    bound2 = 1.0 / jnp.sqrt(hidden)
    w1 = jax.random.uniform(k1, (n_embd, hidden), jnp.float32, -bound1, bound1)
    b1 = jax.random.uniform(k2, (hidden,), jnp.float32, -bound1, bound1)
    w2 = jax.random.uniform(k3, (hidden, n_embd), jnp.float32, -bound2, bound2)
    b2 = jax.random.uniform(k4, (n_embd,), jnp.float32, -bound2, bound2)
    return w1, b1, w2, b2


if __name__ == "__main__":
    n_embd = 128       # lane-dense: E is a multiple of 128 (hidden = 512)
    batch, seq = 2, 8
    dropout = 0.1      # identity in eval mode

    key = jax.random.PRNGKey(0)
    kx, kp = jax.random.split(key)
    x = jax.random.normal(kx, (batch, seq, n_embd), jnp.float32)
    w1, b1, w2, b2 = init_params(kp, n_embd)

    def run(**kw):
        return jax.block_until_ready(feed_forward(x, w1, b1, w2, b2, **kw))

    try:
        out = run()
    except Exception:
        # Portability fallback: if this Pallas build rejects single-buffered
        # (Buffered(1)) weight specs, retry with default double buffering.
        out = run(single_buffer_weights=False)

    # Also exercise the large-E (H-tiled reduction) path on the demo shapes,
    # forcing 4 reduction chunks so the accumulator init/store pattern runs.
    out_ht = run(force_htile=True, th=128)

    # Reference checks: bf16-consistent (mirrors kernel math) and pure f32.
    x2 = x.reshape(-1, n_embd)
    xb_, w1b_, w2b_ = (a.astype(jnp.bfloat16) for a in (x2, w1, w2))
    h = jnp.maximum(jnp.dot(xb_, w1b_, preferred_element_type=jnp.float32) + b1, 0.0)
    ref_bf16 = (jnp.dot(h.astype(jnp.bfloat16), w2b_,
                        preferred_element_type=jnp.float32) + b2)
    ref_bf16 = ref_bf16.reshape(batch, seq, n_embd)
    ref_f32 = (jnp.maximum(x2 @ w1 + b1, 0.0) @ w2 + b2).reshape(batch, seq, n_embd)

    assert out.shape == (batch, seq, n_embd)
    assert out.dtype == x.dtype
    assert jnp.allclose(out, ref_bf16, atol=2e-2, rtol=2e-2)
    assert jnp.allclose(out, ref_f32, atol=6e-2, rtol=6e-2)
    assert out_ht.shape == out.shape and out_ht.dtype == out.dtype
    assert jnp.allclose(out_ht, ref_bf16, atol=2e-2, rtol=2e-2)

    print("KERNEL_OK")
</pallas_src>

<mosaic_0001>
module attributes {stable_mosaic.version = 11 : i64} {
  func.func @_ffn_kernel_resident(%arg0: i32, %arg1: memref<16x128xf32, #tpu.memory_space<vmem>>, %arg2: memref<128x512xbf16, #tpu.memory_space<vmem>>, %arg3: memref<1x512xf32, #tpu.memory_space<vmem>>, %arg4: memref<512x128xbf16, #tpu.memory_space<vmem>>, %arg5: memref<1x128xf32, #tpu.memory_space<vmem>>, %arg6: memref<16x128xf32, #tpu.memory_space<vmem>>) attributes {dimension_semantics = [#tpu.dimension_semantics<parallel>], iteration_bounds = array<i64: 1>, scalar_prefetch = 0 : i64, scratch_operands = 0 : i64, tpu.core_type = #tpu.core_type<tc>, window_params = [{transform_indices = @transform_0, window_bounds = array<i64: 16, 128>}, {pipeline_mode = #tpu.pipeline_mode<synchronous>, transform_indices = @transform_1, window_bounds = array<i64: 128, 512>}, {pipeline_mode = #tpu.pipeline_mode<synchronous>, transform_indices = @transform_2, window_bounds = array<i64: 1, 512>}, {pipeline_mode = #tpu.pipeline_mode<synchronous>, transform_indices = @transform_3, window_bounds = array<i64: 512, 128>}, {pipeline_mode = #tpu.pipeline_mode<synchronous>, transform_indices = @transform_4, window_bounds = array<i64: 1, 128>}, {transform_indices = @transform_5, window_bounds = array<i64: 16, 128>}]} {
    %c0 = arith.constant 0 : index
    %c0_0 = arith.constant 0 : index
    %0 = vector.load %arg1[%c0, %c0_0] : memref<16x128xf32, #tpu.memory_space<vmem>>, vector<16x128xf32>
    %1 = arith.truncf %0 : vector<16x128xf32> to vector<16x128xbf16>
    %c0_1 = arith.constant 0 : index
    %c0_2 = arith.constant 0 : index
    %2 = vector.load %arg2[%c0_1, %c0_2] : memref<128x512xbf16, #tpu.memory_space<vmem>>, vector<128x512xbf16>
    %cst = arith.constant dense<0.000000e+00> : vector<16x512xf32>
    %3 = tpu.matmul %1, %2, %cst {dimension_numbers = #tpu.dot_dimension_numbers<[1], [0], [0], [1], [0, 0, 1, 1], [], []>} : vector<16x128xbf16>, vector<128x512xbf16>, vector<16x512xf32> -> vector<16x512xf32>
    %c0_3 = arith.constant 0 : index
    %c0_4 = arith.constant 0 : index
    %4 = vector.load %arg3[%c0_3, %c0_4] : memref<1x512xf32, #tpu.memory_space<vmem>>, vector<1x512xf32>
    %5 = vector.broadcast %4 : vector<1x512xf32> to vector<16x512xf32>
    %6 = arith.addf %3, %5 : vector<16x512xf32>
    %cst_5 = arith.constant 0.000000e+00 : f32
    %7 = vector.broadcast %cst_5 : f32 to vector<16x512xf32>
    %8 = arith.maximumf %6, %7 : vector<16x512xf32>
    %9 = arith.truncf %8 : vector<16x512xf32> to vector<16x512xbf16>
    %c0_6 = arith.constant 0 : index
    %c0_7 = arith.constant 0 : index
    %10 = vector.load %arg4[%c0_6, %c0_7] : memref<512x128xbf16, #tpu.memory_space<vmem>>, vector<512x128xbf16>
    %cst_8 = arith.constant dense<0.000000e+00> : vector<16x128xf32>
    %11 = tpu.matmul %9, %10, %cst_8 {dimension_numbers = #tpu.dot_dimension_numbers<[1], [0], [0], [1], [0, 0, 1, 1], [], []>} : vector<16x512xbf16>, vector<512x128xbf16>, vector<16x128xf32> -> vector<16x128xf32>
    %c0_9 = arith.constant 0 : index
    %c0_10 = arith.constant 0 : index
    %12 = vector.load %arg5[%c0_9, %c0_10] : memref<1x128xf32, #tpu.memory_space<vmem>>, vector<1x128xf32>
    %13 = vector.broadcast %12 : vector<1x128xf32> to vector<16x128xf32>
    %14 = arith.addf %11, %13 : vector<16x128xf32>
    %c0_11 = arith.constant 0 : index
    %c0_12 = arith.constant 0 : index
    %15 = vector.load %arg6[%c0_11, %c0_12] : memref<16x128xf32, #tpu.memory_space<vmem>>, vector<16x128xf32>
    tpu.vector_store %arg6[%c0_11, %c0_12], %14 {strides = array<i32>} : memref<16x128xf32, #tpu.memory_space<vmem>>, vector<16x128xf32>,
    return
  }
  func.func @transform_0(%arg0: i32) -> (i32, i32) {
    %c0_i32 = arith.constant 0 : i32
    %c0_i32_0 = arith.constant 0 : i32
    return %arg0, %c0_i32 : i32, i32
  }
  func.func @transform_1(%arg0: i32) -> (i32, i32) {
    %c0_i32 = arith.constant 0 : i32
    %c0_i32_0 = arith.constant 0 : i32
    %c0_i32_1 = arith.constant 0 : i32
    return %c0_i32, %c0_i32_0 : i32, i32
  }
  func.func @transform_2(%arg0: i32) -> (i32, i32) {
    %c0_i32 = arith.constant 0 : i32
    %c0_i32_0 = arith.constant 0 : i32
    %c0_i32_1 = arith.constant 0 : i32
    return %c0_i32, %c0_i32_0 : i32, i32
  }
  func.func @transform_3(%arg0: i32) -> (i32, i32) {
    %c0_i32 = arith.constant 0 : i32
    %c0_i32_0 = arith.constant 0 : i32
    %c0_i32_1 = arith.constant 0 : i32
    return %c0_i32, %c0_i32_0 : i32, i32
  }
  func.func @transform_4(%arg0: i32) -> (i32, i32) {
    %c0_i32 = arith.constant 0 : i32
    %c0_i32_0 = arith.constant 0 : i32
    %c0_i32_1 = arith.constant 0 : i32
    return %c0_i32, %c0_i32_0 : i32, i32
  }
  func.func @transform_5(%arg0: i32) -> (i32, i32) {
    %c0_i32 = arith.constant 0 : i32
    %c0_i32_0 = arith.constant 0 : i32
    return %arg0, %c0_i32 : i32, i32
  }
}

module attributes {stable_mosaic.version = 11 : i64} {
  func.func @_ffn_kernel_resident(%arg0: i32, %arg1: memref<16x128xf32, #tpu.memory_space<vmem>>, %arg2: memref<128x512xbf16, #tpu.memory_space<vmem>>, %arg3: memref<1x512xf32, #tpu.memory_space<vmem>>, %arg4: memref<512x128xbf16, #tpu.memory_space<vmem>>, %arg5: memref<1x128xf32, #tpu.memory_space<vmem>>, %arg6: memref<16x128xf32, #tpu.memory_space<vmem>>) attributes {dimension_semantics = [#tpu.dimension_semantics<parallel>], iteration_bounds = array<i64: 1>, scalar_prefetch = 0 : i64, scratch_operands = 0 : i64, tpu.core_type = #tpu.core_type<tc>, window_params = [{transform_indices = @transform_0, window_bounds = array<i64: 16, 128>}, {pipeline_mode = #tpu.pipeline_mode<synchronous>, transform_indices = @transform_1, window_bounds = array<i64: 128, 512>}, {pipeline_mode = #tpu.pipeline_mode<synchronous>, transform_indices = @transform_2, window_bounds = array<i64: 1, 512>}, {pipeline_mode = #tpu.pipeline_mode<synchronous>, transform_indices = @transform_3, window_bounds = array<i64: 512, 128>}, {pipeline_mode = #tpu.pipeline_mode<synchronous>, transform_indices = @transform_4, window_bounds = array<i64: 1, 128>}, {transform_indices = @transform_5, window_bounds = array<i64: 16, 128>}]} {
    %c0 = arith.constant 0 : index
    %c0_0 = arith.constant 0 : index
    %0 = vector.load %arg1[%c0, %c0_0] : memref<16x128xf32, #tpu.memory_space<vmem>>, vector<16x128xf32>
    %1 = arith.truncf %0 : vector<16x128xf32> to vector<16x128xbf16>
    %c0_1 = arith.constant 0 : index
    %c0_2 = arith.constant 0 : index
    %2 = vector.load %arg2[%c0_1, %c0_2] : memref<128x512xbf16, #tpu.memory_space<vmem>>, vector<128x512xbf16>
    %cst = arith.constant dense<0.000000e+00> : vector<16x512xf32>
    %3 = tpu.matmul %1, %2, %cst {dimension_numbers = #tpu.dot_dimension_numbers<[1], [0], [0], [1], [0, 0, 1, 1], [], []>} : vector<16x128xbf16>, vector<128x512xbf16>, vector<16x512xf32> -> vector<16x512xf32>
    %c0_3 = arith.constant 0 : index
    %c0_4 = arith.constant 0 : index
    %4 = vector.load %arg3[%c0_3, %c0_4] : memref<1x512xf32, #tpu.memory_space<vmem>>, vector<1x512xf32>
    %5 = vector.broadcast %4 : vector<1x512xf32> to vector<16x512xf32>
    %6 = arith.addf %3, %5 : vector<16x512xf32>
    %cst_5 = arith.constant 0.000000e+00 : f32
    %7 = vector.broadcast %cst_5 : f32 to vector<16x512xf32>
    %8 = arith.maximumf %6, %7 : vector<16x512xf32>
    %9 = arith.truncf %8 : vector<16x512xf32> to vector<16x512xbf16>
    %c0_6 = arith.constant 0 : index
    %c0_7 = arith.constant 0 : index
    %10 = vector.load %arg4[%c0_6, %c0_7] : memref<512x128xbf16, #tpu.memory_space<vmem>>, vector<512x128xbf16>
    %cst_8 = arith.constant dense<0.000000e+00> : vector<16x128xf32>
    %11 = tpu.matmul %9, %10, %cst_8 {dimension_numbers = #tpu.dot_dimension_numbers<[1], [0], [0], [1], [0, 0, 1, 1], [], []>} : vector<16x512xbf16>, vector<512x128xbf16>, vector<16x128xf32> -> vector<16x128xf32>
    %c0_9 = arith.constant 0 : index
    %c0_10 = arith.constant 0 : index
    %12 = vector.load %arg5[%c0_9, %c0_10] : memref<1x128xf32, #tpu.memory_space<vmem>>, vector<1x128xf32>
    %13 = vector.broadcast %12 : vector<1x128xf32> to vector<16x128xf32>
    %14 = arith.addf %11, %13 : vector<16x128xf32>
    %c0_11 = arith.constant 0 : index
    %c0_12 = arith.constant 0 : index
    %15 = vector.load %arg6[%c0_11, %c0_12] : memref<16x128xf32, #tpu.memory_space<vmem>>, vector<16x128xf32>
    tpu.vector_store %arg6[%c0_11, %c0_12], %14 {strides = array<i32>} : memref<16x128xf32, #tpu.memory_space<vmem>>, vector<16x128xf32>,
    return
  }
  func.func @transform_0(%arg0: i32) -> (i32, i32) {
    %c0_i32 = arith.constant 0 : i32
    %c0_i32_0 = arith.constant 0 : i32
    return %arg0, %c0_i32 : i32, i32
  }
  func.func @transform_1(%arg0: i32) -> (i32, i32) {
    %c0_i32 = arith.constant 0 : i32
    %c0_i32_0 = arith.constant 0 : i32
    %c0_i32_1 = arith.constant 0 : i32
    return %c0_i32, %c0_i32_0 : i32, i32
  }
  func.func @transform_2(%arg0: i32) -> (i32, i32) {
    %c0_i32 = arith.constant 0 : i32
    %c0_i32_0 = arith.constant 0 : i32
    %c0_i32_1 = arith.constant 0 : i32
    return %c0_i32, %c0_i32_0 : i32, i32
  }
  func.func @transform_3(%arg0: i32) -> (i32, i32) {
    %c0_i32 = arith.constant 0 : i32
    %c0_i32_0 = arith.constant 0 : i32
    %c0_i32_1 = arith.constant 0 : i32
    return %c0_i32, %c0_i32_0 : i32, i32
  }
  func.func @transform_4(%arg0: i32) -> (i32, i32) {
    %c0_i32 = arith.constant 0 : i32
    %c0_i32_0 = arith.constant 0 : i32
    %c0_i32_1 = arith.constant 0 : i32
    return %c0_i32, %c0_i32_0 : i32, i32
  }
  func.func @transform_5(%arg0: i32) -> (i32, i32) {
    %c0_i32 = arith.constant 0 : i32
    %c0_i32_0 = arith.constant 0 : i32
    return %arg0, %c0_i32 : i32, i32
  }
}

</mosaic_0001>

<llo_original>
// kernel: feed_forward.1
$region0: #{feed_forward.1}
  #allocation0 [shape = 'u32[]', space=smem, size = 0x4, offset = 0x4, fixed_abs, tag = 'smem constant byte address 0x4 - core index']
  #allocation1 [shape = 'u32[144,128]{1,0:T(1,128)}', space=vmem, size = 0x12000, scoped, tag = 'internal scratch']
  %s0 = inlined_call_operand.vmem [shape: f32[16,128], index: 0, kind: input, shape index: {}]
  %s1 = inlined_call_operand.vmem [shape: bf16[128,512], index: 1, kind: input, shape index: {}]
  %s2 = inlined_call_operand.vmem [shape: f32[1,512], index: 2, kind: input, shape index: {}]
  %s3 = inlined_call_operand.vmem [shape: bf16[512,128], index: 3, kind: input, shape index: {}]
  %s4 = inlined_call_operand.vmem [shape: f32[1,128], index: 4, kind: input, shape index: {}]
  %s5 = inlined_call_operand.hbm [shape: f32[16,128], index: 5, kind: output, shape index: {}]
  %s6 = sld [smem:[#allocation0]]
  $region30: #{feed_forward.1} parent=0
    _
  %s8 = ssub.s32 1, %s6
  %s9 = scalar_select 0, %s8, %s6
  $region1: #{feed_forward.1} parent=0
    #allocation2 [shape = 'u8[8192]{0}', space=vmem, size = 0x2000, scoped, tag = 'output window, operand 0, single buffered']
    #allocation3 [shape = 's32[1]{0}', space=sflag, size = 0x4, scoped, tag = 'scoped memory for feed_forward.1']
    %10 = vsyncpa [#allocation3], 0
    // Predicated region
    $region2: #{feed_forward.1} parent=1 // pred_check
      _
    $region3: #{feed_forward.1} parent=1 // pred_check_branch
      %12 = sbr.rel (0) target = $region5
    $region4: #{feed_forward.1} parent=1 // pred_region
      _
    $region5: #{feed_forward.1} parent=1 // pred_fallthru
      _
    // Predicated region
    $region6: #{feed_forward.1} parent=1 // pred_check
      _
    $region7: #{feed_forward.1} parent=1 // pred_check_branch
      %14 = sbr.rel (0) target = $region9
    $region8: #{feed_forward.1} parent=1 // pred_region
      _
    $region9: #{feed_forward.1} parent=1 // pred_fallthru
      _
    // Predicated region
    $region10: #{feed_forward.1} parent=1 // pred_check
      _
    $region11: #{feed_forward.1} parent=1 // pred_check_branch
      %16 = sbr.rel (0) target = $region13
    $region12: #{feed_forward.1} parent=1 // pred_region
      _
    $region13: #{feed_forward.1} parent=1 // pred_fallthru
      _
    // Predicated region
    $region14: #{feed_forward.1} parent=1 // pred_check
      _
    $region15: #{feed_forward.1} parent=1 // pred_check_branch
      %18 = sbr.rel (0) target = $region17
    $region16: #{feed_forward.1} parent=1 // pred_region
      _
    $region17: #{feed_forward.1} parent=1 // pred_fallthru
      _
    // Predicated region
    $region18: #{feed_forward.1} parent=1 // pred_check
      _
    $region19: #{feed_forward.1} parent=1 // pred_check_branch
      %20 = sbr.rel (0) target = $region21
    $region20: #{feed_forward.1} parent=1 // pred_region
      _
    $region21: #{feed_forward.1} parent=1 // pred_fallthru
      _
    %v22 = vld [vmem:[%s0] sm:$0xff]
    %v23 = vld [vmem:[%s0 + $0x8] sm:$0xff]
    %v24 = vpack.c.bf16 %v23, %v22
    %v25 = vld [vmem:[%s1] sm:$0xff]
    %v26 = vld [vmem:[%s1 + $0x8] sm:$0xff]
    %v27 = vld [vmem:[%s1 + $0x10] sm:$0xff]
    %v28 = vld [vmem:[%s1 + $0x18] sm:$0xff]
    %v29 = vld [vmem:[%s1 + $0x20] sm:$0xff]
    %v30 = vld [vmem:[%s1 + $0x28] sm:$0xff]
    %v31 = vld [vmem:[%s1 + $0x30] sm:$0xff]
    %v32 = vld [vmem:[%s1 + $0x38] sm:$0xff]
    %v33 = vld [vmem:[%s1 + $0x40] sm:$0xff]
    %v34 = vld [vmem:[%s1 + $0x48] sm:$0xff]
    %v35 = vld [vmem:[%s1 + $0x50] sm:$0xff]
    %v36 = vld [vmem:[%s1 + $0x58] sm:$0xff]
    %v37 = vld [vmem:[%s1 + $0x60] sm:$0xff]
    %v38 = vld [vmem:[%s1 + $0x68] sm:$0xff]
    %v39 = vld [vmem:[%s1 + $0x70] sm:$0xff]
    %v40 = vld [vmem:[%s1 + $0x78] sm:$0xff]
    %v41 = vld [vmem:[%s1 + $0x80] sm:$0xff]
    %v42 = vld [vmem:[%s1 + $0x88] sm:$0xff]
    %v43 = vld [vmem:[%s1 + $0x90] sm:$0xff]
    %v44 = vld [vmem:[%s1 + $0x98] sm:$0xff]
    %v45 = vld [vmem:[%s1 + $0xa0] sm:$0xff]
    %v46 = vld [vmem:[%s1 + $0xa8] sm:$0xff]
    %v47 = vld [vmem:[%s1 + $0xb0] sm:$0xff]
    %v48 = vld [vmem:[%s1 + $0xb8] sm:$0xff]
    %v49 = vld [vmem:[%s1 + $0xc0] sm:$0xff]
    %v50 = vld [vmem:[%s1 + $0xc8] sm:$0xff]
    %v51 = vld [vmem:[%s1 + $0xd0] sm:$0xff]
    %v52 = vld [vmem:[%s1 + $0xd8] sm:$0xff]
    %v53 = vld [vmem:[%s1 + $0xe0] sm:$0xff]
    %v54 = vld [vmem:[%s1 + $0xe8] sm:$0xff]
    %v55 = vld [vmem:[%s1 + $0xf0] sm:$0xff]
    %v56 = vld [vmem:[%s1 + $0xf8] sm:$0xff]
    %v57 = vld [vmem:[%s2] sm:$0xf]
    %v59 = vlaneseq
    %v60 = vshrl.u32 %v59, 7
    %v61 = vsub.s32 0, %v60
    %v62 = vrot.slane %v57, %v61
    %v63 = vlaneseq
    %v64 = vshrl.u32 %v63, 7
    %v65 = vsub.s32 1, %v64
    %v66 = vrot.slane %v57, %v65
    %v67 = vlaneseq
    %v68 = vshrl.u32 %v67, 7
    %v69 = vsub.s32 2, %v68
    %v70 = vrot.slane %v57, %v69
    %v71 = vlaneseq
    %v72 = vshrl.u32 %v71, 7
    %v73 = vsub.s32 3, %v72
    %v74 = vrot.slane %v57, %v73
    %v111 = vunpack.c.l.b16 %v25
    %v112 = vunpack.c.h.b16 %v25
    %v113 = vunpack.c.l.b16 %v26
    %v114 = vunpack.c.h.b16 %v26
    %v115 = vunpack.c.l.b16 %v27
    %v116 = vunpack.c.h.b16 %v27
    %v117 = vunpack.c.l.b16 %v28
    %v118 = vunpack.c.h.b16 %v28
    %v119 = vunpack.c.l.b16 %v29
    %v120 = vunpack.c.h.b16 %v29
    %v121 = vunpack.c.l.b16 %v30
    %v122 = vunpack.c.h.b16 %v30
    %v123 = vunpack.c.l.b16 %v31
    %v124 = vunpack.c.h.b16 %v31
    %v125 = vunpack.c.l.b16 %v32
    %v126 = vunpack.c.h.b16 %v32
    %v127 = vunpack.c.l.b16 %v33
    %v128 = vunpack.c.h.b16 %v33
    %v129 = vunpack.c.l.b16 %v34
    %v130 = vunpack.c.h.b16 %v34
    %v131 = vunpack.c.l.b16 %v35
    %v132 = vunpack.c.h.b16 %v35
    %v133 = vunpack.c.l.b16 %v36
    %v134 = vunpack.c.h.b16 %v36
    %v135 = vunpack.c.l.b16 %v37
    %v136 = vunpack.c.h.b16 %v37
    %v137 = vunpack.c.l.b16 %v38
    %v138 = vunpack.c.h.b16 %v38
    %v139 = vunpack.c.l.b16 %v39
    %v140 = vunpack.c.h.b16 %v39
    %v141 = vunpack.c.l.b16 %v40
    %v142 = vunpack.c.h.b16 %v40
    %v143 = vunpack.c.l.b16 %v41
    %v144 = vunpack.c.h.b16 %v41
    %v145 = vunpack.c.l.b16 %v42
    %v146 = vunpack.c.h.b16 %v42
    %v147 = vunpack.c.l.b16 %v43
    %v148 = vunpack.c.h.b16 %v43
    %v149 = vunpack.c.l.b16 %v44
    %v150 = vunpack.c.h.b16 %v44
    %v151 = vunpack.c.l.b16 %v45
    %v152 = vunpack.c.h.b16 %v45
    %v153 = vunpack.c.l.b16 %v46
    %v154 = vunpack.c.h.b16 %v46
    %v155 = vunpack.c.l.b16 %v47
    %v156 = vunpack.c.h.b16 %v47
    %v157 = vunpack.c.l.b16 %v48
    %v158 = vunpack.c.h.b16 %v48
    %v159 = vunpack.c.l.b16 %v49
    %v160 = vunpack.c.h.b16 %v49
    %v161 = vunpack.c.l.b16 %v50
    %v162 = vunpack.c.h.b16 %v50
    %v163 = vunpack.c.l.b16 %v51
    %v164 = vunpack.c.h.b16 %v51
    %v165 = vunpack.c.l.b16 %v52
    %v166 = vunpack.c.h.b16 %v52
    %v167 = vunpack.c.l.b16 %v53
    %v168 = vunpack.c.h.b16 %v53
    %v169 = vunpack.c.l.b16 %v54
    %v170 = vunpack.c.h.b16 %v54
    %v171 = vunpack.c.l.b16 %v55
    %v172 = vunpack.c.h.b16 %v55
    %v173 = vunpack.c.l.b16 %v56
    %v174 = vunpack.c.h.b16 %v56
    %v175 = vpack.c.b16 %v115, %v111
    %v176 = vpack.c.b16 %v116, %v112
    %v177 = vpack.c.b16 %v117, %v113
    %v178 = vpack.c.b16 %v118, %v114
    %v179 = vpack.c.b16 %v123, %v119
    %v180 = vpack.c.b16 %v124, %v120
    %v181 = vpack.c.b16 %v125, %v121
    %v182 = vpack.c.b16 %v126, %v122
    %v183 = vpack.c.b16 %v131, %v127
    %v184 = vpack.c.b16 %v132, %v128
    %v185 = vpack.c.b16 %v133, %v129
    %v186 = vpack.c.b16 %v134, %v130
    %v187 = vpack.c.b16 %v139, %v135
    %v188 = vpack.c.b16 %v140, %v136
    %v189 = vpack.c.b16 %v141, %v137
    %v190 = vpack.c.b16 %v142, %v138
    %v191 = vpack.c.b16 %v147, %v143
    %v192 = vpack.c.b16 %v148, %v144
    %v193 = vpack.c.b16 %v149, %v145
    %v194 = vpack.c.b16 %v150, %v146
    %v195 = vpack.c.b16 %v155, %v151
    %v196 = vpack.c.b16 %v156, %v152
    %v197 = vpack.c.b16 %v157, %v153
    %v198 = vpack.c.b16 %v158, %v154
    %v199 = vpack.c.b16 %v163, %v159
    %v200 = vpack.c.b16 %v164, %v160
    %v201 = vpack.c.b16 %v165, %v161
    %v202 = vpack.c.b16 %v166, %v162
    %v203 = vpack.c.b16 %v171, %v167
    %v204 = vpack.c.b16 %v172, %v168
    %v205 = vpack.c.b16 %v173, %v169
    %v206 = vpack.c.b16 %v174, %v170
    %239 = vmatprep.subr.bf16.mxu0 %v176
    %240 = vmatpush1.bf16.msra.mxu0 %v175
    %241 = vmatprep.subr.bf16.mxu0 %v180
    %242 = vmatpush1.bf16.msra.mxu0 %v179
    %243 = vmatprep.subr.bf16.mxu0 %v184
    %244 = vmatpush1.bf16.msra.mxu0 %v183
    %245 = vmatprep.subr.bf16.mxu0 %v188
    %246 = vmatpush1.bf16.msra.mxu0 %v187
    %247 = vmatprep.subr.bf16.mxu0 %v192
    %248 = vmatpush1.bf16.msra.mxu0 %v191
    %249 = vmatprep.subr.bf16.mxu0 %v196
    %250 = vmatpush1.bf16.msra.mxu0 %v195
    %251 = vmatprep.subr.bf16.mxu0 %v200
    %252 = vmatpush1.bf16.msra.mxu0 %v199
    %253 = vmatprep.subr.bf16.mxu0 %v204
    %254 = vmatpush1.bf16.msra.mxu0 %v203
    %255 = vmatprep.subr.bf16.mxu0 0
    %256 = vmatpush1.bf16.msra.mxu0 0
    %257 = vmatprep.subr.bf16.mxu0 0
    %258 = vmatpush1.bf16.msra.mxu0 0
    %259 = vmatprep.subr.bf16.mxu0 0
    %260 = vmatpush1.bf16.msra.mxu0 0
    %261 = vmatprep.subr.bf16.mxu0 0
    %262 = vmatpush1.bf16.msra.mxu0 0
    %263 = vmatprep.subr.bf16.mxu0 0
    %264 = vmatpush1.bf16.msra.mxu0 0
    %265 = vmatprep.subr.bf16.mxu0 0
    %266 = vmatpush1.bf16.msra.mxu0 0
    %267 = vmatprep.subr.bf16.mxu0 0
    %268 = vmatpush1.bf16.msra.mxu0 0
    %269 = vmatprep.subr.bf16.mxu0 0
    %270 = vmatpush1.bf16.msra.mxu0 0
    %271 = vmatprep.mubr.bf16.mxu0 0
    %272 = vmatmul.mubr.bf16.gmra.mrb[0].mxu0 %v24
    %v273 = vpop.f32.mrb[0].mxu0
    %v274 = vadd.f32 %v62, %v273
    %v275 = vpop.f32.mrb[0].mxu0
    %v276 = vadd.f32 %v66, %v275
    %v277 = vpop.f32.mrb[0].mxu0
    %v278 = vadd.f32 %v62, %v277
    %v279 = vpop.f32.mrb[0].mxu0
    %v280 = vadd.f32 %v66, %v279
    %281 = vdwg.mxu0
    %282 = vmatprep.subr.bf16.mxu0 %v178
    %283 = vmatpush1.bf16.msra.mxu0 %v177
    %284 = vmatprep.subr.bf16.mxu0 %v182
    %285 = vmatpush1.bf16.msra.mxu0 %v181
    %286 = vmatprep.subr.bf16.mxu0 %v186
    %287 = vmatpush1.bf16.msra.mxu0 %v185
    %288 = vmatprep.subr.bf16.mxu0 %v190
    %289 = vmatpush1.bf16.msra.mxu0 %v189
    %290 = vmatprep.subr.bf16.mxu0 %v194
    %291 = vmatpush1.bf16.msra.mxu0 %v193
    %292 = vmatprep.subr.bf16.mxu0 %v198
    %293 = vmatpush1.bf16.msra.mxu0 %v197
    %294 = vmatprep.subr.bf16.mxu0 %v202
    %295 = vmatpush1.bf16.msra.mxu0 %v201
    %296 = vmatprep.subr.bf16.mxu0 %v206
    %297 = vmatpush1.bf16.msra.mxu0 %v205
    %298 = vmatprep.subr.bf16.mxu0 0
    %299 = vmatpush1.bf16.msra.mxu0 0
    %300 = vmatprep.subr.bf16.mxu0 0
    %301 = vmatpush1.bf16.msra.mxu0 0
    %302 = vmatprep.subr.bf16.mxu0 0
    %303 = vmatpush1.bf16.msra.mxu0 0
    %304 = vmatprep.subr.bf16.mxu0 0
    %305 = vmatpush1.bf16.msra.mxu0 0
    %306 = vmatprep.subr.bf16.mxu0 0
    %307 = vmatpush1.bf16.msra.mxu0 0
    %308 = vmatprep.subr.bf16.mxu0 0
    %309 = vmatpush1.bf16.msra.mxu0 0
    %310 = vmatprep.subr.bf16.mxu0 0
    %311 = vmatpush1.bf16.msra.mxu0 0
    %312 = vmatprep.subr.bf16.mxu0 0
    %313 = vmatpush1.bf16.msra.mxu0 0
    %314 = vmatprep.mubr.bf16.mxu0 0
    %315 = vmatmul.mubr.bf16.gmra.mrb[0].mxu0 %v24
    %v316 = vpop.f32.mrb[0].mxu0
    %v317 = vadd.f32 %v70, %v316
    %v318 = vpop.f32.mrb[0].mxu0
    %v319 = vadd.f32 %v74, %v318
    %v320 = vpop.f32.mrb[0].mxu0
    %v321 = vadd.f32 %v70, %v320
    %v322 = vpop.f32.mrb[0].mxu0
    %v323 = vadd.f32 %v74, %v322
    %324 = vdwg.mxu0
    %v325 = vmax.f32 %v274, 0.0
    %v326 = vmax.f32 %v276, 0.0
    %v327 = vmax.f32 %v317, 0.0
    %v328 = vmax.f32 %v319, 0.0
    %v329 = vmax.f32 %v278, 0.0
    %v330 = vmax.f32 %v280, 0.0
    %v331 = vmax.f32 %v321, 0.0
    %v332 = vmax.f32 %v323, 0.0
    %v333 = vpack.c.bf16 %v329, %v325
    %v334 = vpack.c.bf16 %v330, %v326
    %v335 = vpack.c.bf16 %v331, %v327
    %v336 = vpack.c.bf16 %v332, %v328
    %v337 = vld [vmem:[%s3] sm:$0xf]
    %v338 = vld [vmem:[%s3 + $0x4] sm:$0xf]
    %v339 = vld [vmem:[%s3 + $0x8] sm:$0xf]
    %v340 = vld [vmem:[%s3 + $0xc] sm:$0xf]
    %v341 = vld [vmem:[%s3 + $0x10] sm:$0xf]
    %v342 = vld [vmem:[%s3 + $0x14] sm:$0xf]
    %v343 = vld [vmem:[%s3 + $0x18] sm:$0xf]
    %v344 = vld [vmem:[%s3 + $0x1c] sm:$0xf]
    %v345 = vld [vmem:[%s3 + $0x20] sm:$0xf]
    %v346 = vld [vmem:[%s3 + $0x24] sm:$0xf]
    %v347 = vld [vmem:[%s3 + $0x28] sm:$0xf]
    %v348 = vld [vmem:[%s3 + $0x2c] sm:$0xf]
    %v349 = vld [vmem:[%s3 + $0x30] sm:$0xf]
    %v350 = vld [vmem:[%s3 + $0x34] sm:$0xf]
    %v351 = vld [vmem:[%s3 + $0x38] sm:$0xf]
    %v352 = vld [vmem:[%s3 + $0x3c] sm:$0xf]
    %v353 = vld [vmem:[%s3 + $0x40] sm:$0xf]
    %v354 = vld [vmem:[%s3 + $0x44] sm:$0xf]
    %v355 = vld [vmem:[%s3 + $0x48] sm:$0xf]
    %v356 = vld [vmem:[%s3 + $0x4c] sm:$0xf]
    %v357 = vld [vmem:[%s3 + $0x50] sm:$0xf]
    %v358 = vld [vmem:[%s3 + $0x54] sm:$0xf]
    %v359 = vld [vmem:[%s3 + $0x58] sm:$0xf]
    %v360 = vld [vmem:[%s3 + $0x5c] sm:$0xf]
    %v361 = vld [vmem:[%s3 + $0x60] sm:$0xf]
    %v362 = vld [vmem:[%s3 + $0x64] sm:$0xf]
    %v363 = vld [vmem:[%s3 + $0x68] sm:$0xf]
    %v364 = vld [vmem:[%s3 + $0x6c] sm:$0xf]
    %v365 = vld [vmem:[%s3 + $0x70] sm:$0xf]
    %v366 = vld [vmem:[%s3 + $0x74] sm:$0xf]
    %v367 = vld [vmem:[%s3 + $0x78] sm:$0xf]
    %v368 = vld [vmem:[%s3 + $0x7c] sm:$0xf]
    %v369 = vld [vmem:[%s3 + $0x80] sm:$0xf]
    %v370 = vld [vmem:[%s3 + $0x84] sm:$0xf]
    %v371 = vld [vmem:[%s3 + $0x88] sm:$0xf]
    %v372 = vld [vmem:[%s3 + $0x8c] sm:$0xf]
    %v373 = vld [vmem:[%s3 + $0x90] sm:$0xf]
    %v374 = vld [vmem:[%s3 + $0x94] sm:$0xf]
    %v375 = vld [vmem:[%s3 + $0x98] sm:$0xf]
    %v376 = vld [vmem:[%s3 + $0x9c] sm:$0xf]
    %v377 = vld [vmem:[%s3 + $0xa0] sm:$0xf]
    %v378 = vld [vmem:[%s3 + $0xa4] sm:$0xf]
    %v379 = vld [vmem:[%s3 + $0xa8] sm:$0xf]
    %v380 = vld [vmem:[%s3 + $0xac] sm:$0xf]
    %v381 = vld [vmem:[%s3 + $0xb0] sm:$0xf]
    %v382 = vld [vmem:[%s3 + $0xb4] sm:$0xf]
    %v383 = vld [vmem:[%s3 + $0xb8] sm:$0xf]
    %v384 = vld [vmem:[%s3 + $0xbc] sm:$0xf]
    %v385 = vld [vmem:[%s3 + $0xc0] sm:$0xf]
    %v386 = vld [vmem:[%s3 + $0xc4] sm:$0xf]
    %v387 = vld [vmem:[%s3 + $0xc8] sm:$0xf]
    %v388 = vld [vmem:[%s3 + $0xcc] sm:$0xf]
    %v389 = vld [vmem:[%s3 + $0xd0] sm:$0xf]
    %v390 = vld [vmem:[%s3 + $0xd4] sm:$0xf]
    %v391 = vld [vmem:[%s3 + $0xd8] sm:$0xf]
    %v392 = vld [vmem:[%s3 + $0xdc] sm:$0xf]
    %v393 = vld [vmem:[%s3 + $0xe0] sm:$0xf]
    %v394 = vld [vmem:[%s3 + $0xe4] sm:$0xf]
    %v395 = vld [vmem:[%s3 + $0xe8] sm:$0xf]
    %v396 = vld [vmem:[%s3 + $0xec] sm:$0xf]
    %v397 = vld [vmem:[%s3 + $0xf0] sm:$0xf]
    %v398 = vld [vmem:[%s3 + $0xf4] sm:$0xf]
    %v399 = vld [vmem:[%s3 + $0xf8] sm:$0xf]
    %v400 = vld [vmem:[%s3 + $0xfc] sm:$0xf]
    %v401 = vld [vmem:[%s4] sm:$0x1]
    %v403 = vlaneseq
    %v404 = vshrl.u32 %v403, 7
    %v405 = vsub.s32 0, %v404
    %v406 = vrot.slane %v401, %v405
    %v472 = vunpack.c.l.b16 %v337
    %v473 = vunpack.c.l.b16 %v338
    %v474 = vunpack.c.l.b16 %v339
    %v475 = vunpack.c.l.b16 %v340
    %v476 = vunpack.c.l.b16 %v341
    %v477 = vunpack.c.l.b16 %v342
    %v478 = vunpack.c.l.b16 %v343
    %v479 = vunpack.c.l.b16 %v344
    %v480 = vunpack.c.l.b16 %v345
    %v481 = vunpack.c.l.b16 %v346
    %v482 = vunpack.c.l.b16 %v347
    %v483 = vunpack.c.l.b16 %v348
    %v484 = vunpack.c.l.b16 %v349
    %v485 = vunpack.c.l.b16 %v350
    %v486 = vunpack.c.l.b16 %v351
    %v487 = vunpack.c.l.b16 %v352
    %v488 = vunpack.c.l.b16 %v353
    %v489 = vunpack.c.l.b16 %v354
    %v490 = vunpack.c.l.b16 %v355
    %v491 = vunpack.c.l.b16 %v356
    %v492 = vunpack.c.l.b16 %v357
    %v493 = vunpack.c.l.b16 %v358
    %v494 = vunpack.c.l.b16 %v359
    %v495 = vunpack.c.l.b16 %v360
    %v496 = vunpack.c.l.b16 %v361
    %v497 = vunpack.c.l.b16 %v362
    %v498 = vunpack.c.l.b16 %v363
    %v499 = vunpack.c.l.b16 %v364
    %v500 = vunpack.c.l.b16 %v365
    %v501 = vunpack.c.l.b16 %v366
    %v502 = vunpack.c.l.b16 %v367
    %v503 = vunpack.c.l.b16 %v368
    %v504 = vunpack.c.l.b16 %v369
    %v505 = vunpack.c.l.b16 %v370
    %v506 = vunpack.c.l.b16 %v371
    %v507 = vunpack.c.l.b16 %v372
    %v508 = vunpack.c.l.b16 %v373
    %v509 = vunpack.c.l.b16 %v374
    %v510 = vunpack.c.l.b16 %v375
    %v511 = vunpack.c.l.b16 %v376
    %v512 = vunpack.c.l.b16 %v377
    %v513 = vunpack.c.l.b16 %v378
    %v514 = vunpack.c.l.b16 %v379
    %v515 = vunpack.c.l.b16 %v380
    %v516 = vunpack.c.l.b16 %v381
    %v517 = vunpack.c.l.b16 %v382
    %v518 = vunpack.c.l.b16 %v383
    %v519 = vunpack.c.l.b16 %v384
    %v520 = vunpack.c.l.b16 %v385
    %v521 = vunpack.c.l.b16 %v386
    %v522 = vunpack.c.l.b16 %v387
    %v523 = vunpack.c.l.b16 %v388
    %v524 = vunpack.c.l.b16 %v389
    %v525 = vunpack.c.l.b16 %v390
    %v526 = vunpack.c.l.b16 %v391
    %v527 = vunpack.c.l.b16 %v392
    %v528 = vunpack.c.l.b16 %v393
    %v529 = vunpack.c.l.b16 %v394
    %v530 = vunpack.c.l.b16 %v395
    %v531 = vunpack.c.l.b16 %v396
    %v532 = vunpack.c.l.b16 %v397
    %v533 = vunpack.c.l.b16 %v398
    %v534 = vunpack.c.l.b16 %v399
    %v535 = vunpack.c.l.b16 %v400
    %v536 = vpack.c.b16 %v473, %v472
    %v537 = vpack.c.b16 %v475, %v474
    %v538 = vpack.c.b16 %v477, %v476
    %v539 = vpack.c.b16 %v479, %v478
    %v540 = vpack.c.b16 %v481, %v480
    %v541 = vpack.c.b16 %v483, %v482
    %v542 = vpack.c.b16 %v485, %v484
    %v543 = vpack.c.b16 %v487, %v486
    %v544 = vpack.c.b16 %v489, %v488
    %v545 = vpack.c.b16 %v491, %v490
    %v546 = vpack.c.b16 %v493, %v492
    %v547 = vpack.c.b16 %v495, %v494
    %v548 = vpack.c.b16 %v497, %v496
    %v549 = vpack.c.b16 %v499, %v498
    %v550 = vpack.c.b16 %v501, %v500
    %v551 = vpack.c.b16 %v503, %v502
    %v552 = vpack.c.b16 %v505, %v504
    %v553 = vpack.c.b16 %v507, %v506
    %v554 = vpack.c.b16 %v509, %v508
    %v555 = vpack.c.b16 %v511, %v510
    %v556 = vpack.c.b16 %v513, %v512
    %v557 = vpack.c.b16 %v515, %v514
    %v558 = vpack.c.b16 %v517, %v516
    %v559 = vpack.c.b16 %v519, %v518
    %v560 = vpack.c.b16 %v521, %v520
    %v561 = vpack.c.b16 %v523, %v522
    %v562 = vpack.c.b16 %v525, %v524
    %v563 = vpack.c.b16 %v527, %v526
    %v564 = vpack.c.b16 %v529, %v528
    %v565 = vpack.c.b16 %v531, %v530
    %v566 = vpack.c.b16 %v533, %v532
    %v567 = vpack.c.b16 %v535, %v534
    %600 = vmatprep.subr.bf16.mxu0 0
    %601 = vmatpush1.bf16.msra.mxu0 %v536
    %602 = vmatprep.subr.bf16.mxu0 0
    %603 = vmatpush1.bf16.msra.mxu0 %v537
    %604 = vmatprep.subr.bf16.mxu0 0
    %605 = vmatpush1.bf16.msra.mxu0 %v538
    %606 = vmatprep.subr.bf16.mxu0 0
    %607 = vmatpush1.bf16.msra.mxu0 %v539
    %608 = vmatprep.subr.bf16.mxu0 0
    %609 = vmatpush1.bf16.msra.mxu0 %v540
    %610 = vmatprep.subr.bf16.mxu0 0
    %611 = vmatpush1.bf16.msra.mxu0 %v541
    %612 = vmatprep.subr.bf16.mxu0 0
    %613 = vmatpush1.bf16.msra.mxu0 %v542
    %614 = vmatprep.subr.bf16.mxu0 0
    %615 = vmatpush1.bf16.msra.mxu0 %v543
    %616 = vmatprep.subr.bf16.mxu0 0
    %617 = vmatpush1.bf16.msra.mxu0 %v544
    %618 = vmatprep.subr.bf16.mxu0 0
    %619 = vmatpush1.bf16.msra.mxu0 %v545
    %620 = vmatprep.subr.bf16.mxu0 0
    %621 = vmatpush1.bf16.msra.mxu0 %v546
    %622 = vmatprep.subr.bf16.mxu0 0
    %623 = vmatpush1.bf16.msra.mxu0 %v547
    %624 = vmatprep.subr.bf16.mxu0 0
    %625 = vmatpush1.bf16.msra.mxu0 %v548
    %626 = vmatprep.subr.bf16.mxu0 0
    %627 = vmatpush1.bf16.msra.mxu0 %v549
    %628 = vmatprep.subr.bf16.mxu0 0
    %629 = vmatpush1.bf16.msra.mxu0 %v550
    %630 = vmatprep.subr.bf16.mxu0 0
    %631 = vmatpush1.bf16.msra.mxu0 %v551
    %632 = vmatprep.mubr.bf16.mxu0 %v334
    %633 = vmatmul.mubr.bf16.gmra.mrb[0].mxu0 %v333
    %v634 = vpop.f32.mrb[0].mxu0
    %v635 = vadd.f32 %v406, %v634
    %v636 = vpop.f32.mrb[0].mxu0
    %v637 = vpop.f32.mrb[0].mxu0
    %v638 = vadd.f32 %v406, %v637
    %v639 = vpop.f32.mrb[0].mxu0
    %640 = vdwg.mxu0
    %641 = vmatprep.subr.bf16.mxu0 0
    %642 = vmatpush1.bf16.msra.mxu0 %v552
    %643 = vmatprep.subr.bf16.mxu0 0
    %644 = vmatpush1.bf16.msra.mxu0 %v553
    %645 = vmatprep.subr.bf16.mxu0 0
    %646 = vmatpush1.bf16.msra.mxu0 %v554
    %647 = vmatprep.subr.bf16.mxu0 0
    %648 = vmatpush1.bf16.msra.mxu0 %v555
    %649 = vmatprep.subr.bf16.mxu0 0
    %650 = vmatpush1.bf16.msra.mxu0 %v556
    %651 = vmatprep.subr.bf16.mxu0 0
    %652 = vmatpush1.bf16.msra.mxu0 %v557
    %653 = vmatprep.subr.bf16.mxu0 0
    %654 = vmatpush1.bf16.msra.mxu0 %v558
    %655 = vmatprep.subr.bf16.mxu0 0
    %656 = vmatpush1.bf16.msra.mxu0 %v559
    %657 = vmatprep.subr.bf16.mxu0 0
    %658 = vmatpush1.bf16.msra.mxu0 %v560
    %659 = vmatprep.subr.bf16.mxu0 0
    %660 = vmatpush1.bf16.msra.mxu0 %v561
    %661 = vmatprep.subr.bf16.mxu0 0
    %662 = vmatpush1.bf16.msra.mxu0 %v562
    %663 = vmatprep.subr.bf16.mxu0 0
    %664 = vmatpush1.bf16.msra.mxu0 %v563
    %665 = vmatprep.subr.bf16.mxu0 0
    %666 = vmatpush1.bf16.msra.mxu0 %v564
    %667 = vmatprep.subr.bf16.mxu0 0
    %668 = vmatpush1.bf16.msra.mxu0 %v565
    %669 = vmatprep.subr.bf16.mxu0 0
    %670 = vmatpush1.bf16.msra.mxu0 %v566
    %671 = vmatprep.subr.bf16.mxu0 0
    %672 = vmatpush1.bf16.msra.mxu0 %v567
    %673 = vmatprep.mubr.bf16.mxu0 %v336
    %674 = vmatmul.mubr.bf16.gmra.mrb[0].mxu0 %v335
    %v675 = vpop.f32.mrb[0].mxu0
    %v676 = vadd.f32 %v635, %v675
    %v677 = vpop.f32.mrb[0].mxu0
    %v678 = vpop.f32.mrb[0].mxu0
    %v679 = vadd.f32 %v638, %v678
    %v680 = vpop.f32.mrb[0].mxu0
    %681 = vdwg.mxu0
    %682 = vst [vmem:[#allocation2] sm:$0xff] %v676
    %683 = vst [vmem:[#allocation2 + $0x8] sm:$0xff] %v679
    // Predicated region
    $region22: #{feed_forward.1} parent=1 // pred_check
      _
    $region23: #{feed_forward.1} parent=1 // pred_check_branch
      %685 = sbr.rel (0) target = $region25
    $region24: #{feed_forward.1} parent=1 // pred_region
      %s687 = ssub.s32 256, 256
      %688 = vsyncadd [#allocation3], %s687
      %s689 = sshll.u32 [#allocation2], 4
      %s690 = int_to_ptr.vmem [resolvable:$true] %s689
      %695 = dma.vmem_to_hbm [thread:$0]  %s690, 256, %s5, [#allocation3], 128, 128, 8
    $region25: #{feed_forward.1} parent=1 // pred_fallthru
      _
    // Predicated region
    $region26: #{feed_forward.1} parent=1 // pred_check
      _
    $region27: #{feed_forward.1} parent=1 // pred_check_branch
      %697 = sbr.rel (0) target = $region29
    $region28: #{feed_forward.1} parent=1 // pred_region
      %698 = dma.done [#allocation3], 256
    $region29: #{feed_forward.1} parent=1 // pred_fallthru
      _
    %699 = vsyncpa [#allocation3], 1

// kernel: feed_forward.1
$region0: #{feed_forward.1}
  #allocation0 [shape = 'u32[]', space=smem, size = 0x4, offset = 0x4, fixed_abs, tag = 'smem constant byte address 0x4 - core index']
  #allocation1 [shape = 'u32[144,128]{1,0:T(1,128)}', space=vmem, size = 0x12000, scoped, tag = 'internal scratch']
  %s0 = inlined_call_operand.vmem [shape: f32[16,128], index: 0, kind: input, shape index: {}]
  %s1 = inlined_call_operand.vmem [shape: bf16[128,512], index: 1, kind: input, shape index: {}]
  %s2 = inlined_call_operand.vmem [shape: f32[1,512], index: 2, kind: input, shape index: {}]
  %s3 = inlined_call_operand.vmem [shape: bf16[512,128], index: 3, kind: input, shape index: {}]
  %s4 = inlined_call_operand.vmem [shape: f32[1,128], index: 4, kind: input, shape index: {}]
  %s5 = inlined_call_operand.hbm [shape: f32[16,128], index: 5, kind: output, shape index: {}]
  %s6 = sld [smem:[#allocation0]]
  $region30: #{feed_forward.1} parent=0
    _
  %s8 = ssub.s32 1, %s6
  %s9 = scalar_select 0, %s8, %s6
  $region1: #{feed_forward.1} parent=0
    #allocation2 [shape = 'u8[8192]{0}', space=vmem, size = 0x2000, scoped, tag = 'output window, operand 0, single buffered']
    #allocation3 [shape = 's32[1]{0}', space=sflag, size = 0x4, scoped, tag = 'scoped memory for feed_forward.1']
    %10 = vsyncpa [#allocation3], 0
    // Predicated region
    $region2: #{feed_forward.1} parent=1 // pred_check
      _
    $region3: #{feed_forward.1} parent=1 // pred_check_branch
      %12 = sbr.rel (0) target = $region5
    $region4: #{feed_forward.1} parent=1 // pred_region
      _
    $region5: #{feed_forward.1} parent=1 // pred_fallthru
      _
    // Predicated region
    $region6: #{feed_forward.1} parent=1 // pred_check
      _
    $region7: #{feed_forward.1} parent=1 // pred_check_branch
      %14 = sbr.rel (0) target = $region9
    $region8: #{feed_forward.1} parent=1 // pred_region
      _
    $region9: #{feed_forward.1} parent=1 // pred_fallthru
      _
    // Predicated region
    $region10: #{feed_forward.1} parent=1 // pred_check
      _
    $region11: #{feed_forward.1} parent=1 // pred_check_branch
      %16 = sbr.rel (0) target = $region13
    $region12: #{feed_forward.1} parent=1 // pred_region
      _
    $region13: #{feed_forward.1} parent=1 // pred_fallthru
      _
    // Predicated region
    $region14: #{feed_forward.1} parent=1 // pred_check
      _
    $region15: #{feed_forward.1} parent=1 // pred_check_branch
      %18 = sbr.rel (0) target = $region17
    $region16: #{feed_forward.1} parent=1 // pred_region
      _
    $region17: #{feed_forward.1} parent=1 // pred_fallthru
      _
    // Predicated region
    $region18: #{feed_forward.1} parent=1 // pred_check
      _
    $region19: #{feed_forward.1} parent=1 // pred_check_branch
      %20 = sbr.rel (0) target = $region21
    $region20: #{feed_forward.1} parent=1 // pred_region
      _
    $region21: #{feed_forward.1} parent=1 // pred_fallthru
      _
    %v22 = vld [vmem:[%s0] sm:$0xff]
    %v23 = vld [vmem:[%s0 + $0x8] sm:$0xff]
    %v24 = vpack.c.bf16 %v23, %v22
    %v25 = vld [vmem:[%s1] sm:$0xff]
    %v26 = vld [vmem:[%s1 + $0x8] sm:$0xff]
    %v27 = vld [vmem:[%s1 + $0x10] sm:$0xff]
    %v28 = vld [vmem:[%s1 + $0x18] sm:$0xff]
    %v29 = vld [vmem:[%s1 + $0x20] sm:$0xff]
    %v30 = vld [vmem:[%s1 + $0x28] sm:$0xff]
    %v31 = vld [vmem:[%s1 + $0x30] sm:$0xff]
    %v32 = vld [vmem:[%s1 + $0x38] sm:$0xff]
    %v33 = vld [vmem:[%s1 + $0x40] sm:$0xff]
    %v34 = vld [vmem:[%s1 + $0x48] sm:$0xff]
    %v35 = vld [vmem:[%s1 + $0x50] sm:$0xff]
    %v36 = vld [vmem:[%s1 + $0x58] sm:$0xff]
    %v37 = vld [vmem:[%s1 + $0x60] sm:$0xff]
    %v38 = vld [vmem:[%s1 + $0x68] sm:$0xff]
    %v39 = vld [vmem:[%s1 + $0x70] sm:$0xff]
    %v40 = vld [vmem:[%s1 + $0x78] sm:$0xff]
    %v41 = vld [vmem:[%s1 + $0x80] sm:$0xff]
    %v42 = vld [vmem:[%s1 + $0x88] sm:$0xff]
    %v43 = vld [vmem:[%s1 + $0x90] sm:$0xff]
    %v44 = vld [vmem:[%s1 + $0x98] sm:$0xff]
    %v45 = vld [vmem:[%s1 + $0xa0] sm:$0xff]
    %v46 = vld [vmem:[%s1 + $0xa8] sm:$0xff]
    %v47 = vld [vmem:[%s1 + $0xb0] sm:$0xff]
    %v48 = vld [vmem:[%s1 + $0xb8] sm:$0xff]
    %v49 = vld [vmem:[%s1 + $0xc0] sm:$0xff]
    %v50 = vld [vmem:[%s1 + $0xc8] sm:$0xff]
    %v51 = vld [vmem:[%s1 + $0xd0] sm:$0xff]
    %v52 = vld [vmem:[%s1 + $0xd8] sm:$0xff]
    %v53 = vld [vmem:[%s1 + $0xe0] sm:$0xff]
    %v54 = vld [vmem:[%s1 + $0xe8] sm:$0xff]
    %v55 = vld [vmem:[%s1 + $0xf0] sm:$0xff]
    %v56 = vld [vmem:[%s1 + $0xf8] sm:$0xff]
    %v57 = vld [vmem:[%s2] sm:$0xf]
    %v59 = vlaneseq
    %v60 = vshrl.u32 %v59, 7
    %v61 = vsub.s32 0, %v60
    %v62 = vrot.slane %v57, %v61
    %v63 = vlaneseq
    %v64 = vshrl.u32 %v63, 7
    %v65 = vsub.s32 1, %v64
    %v66 = vrot.slane %v57, %v65
    %v67 = vlaneseq
    %v68 = vshrl.u32 %v67, 7
    %v69 = vsub.s32 2, %v68
    %v70 = vrot.slane %v57, %v69
    %v71 = vlaneseq
    %v72 = vshrl.u32 %v71, 7
    %v73 = vsub.s32 3, %v72
    %v74 = vrot.slane %v57, %v73
    %v111 = vunpack.c.l.b16 %v25
    %v112 = vunpack.c.h.b16 %v25
    %v113 = vunpack.c.l.b16 %v26
    %v114 = vunpack.c.h.b16 %v26
    %v115 = vunpack.c.l.b16 %v27
    %v116 = vunpack.c.h.b16 %v27
    %v117 = vunpack.c.l.b16 %v28
    %v118 = vunpack.c.h.b16 %v28
    %v119 = vunpack.c.l.b16 %v29
    %v120 = vunpack.c.h.b16 %v29
    %v121 = vunpack.c.l.b16 %v30
    %v122 = vunpack.c.h.b16 %v30
    %v123 = vunpack.c.l.b16 %v31
    %v124 = vunpack.c.h.b16 %v31
    %v125 = vunpack.c.l.b16 %v32
    %v126 = vunpack.c.h.b16 %v32
    %v127 = vunpack.c.l.b16 %v33
    %v128 = vunpack.c.h.b16 %v33
    %v129 = vunpack.c.l.b16 %v34
    %v130 = vunpack.c.h.b16 %v34
    %v131 = vunpack.c.l.b16 %v35
    %v132 = vunpack.c.h.b16 %v35
    %v133 = vunpack.c.l.b16 %v36
    %v134 = vunpack.c.h.b16 %v36
    %v135 = vunpack.c.l.b16 %v37
    %v136 = vunpack.c.h.b16 %v37
    %v137 = vunpack.c.l.b16 %v38
    %v138 = vunpack.c.h.b16 %v38
    %v139 = vunpack.c.l.b16 %v39
    %v140 = vunpack.c.h.b16 %v39
    %v141 = vunpack.c.l.b16 %v40
    %v142 = vunpack.c.h.b16 %v40
    %v143 = vunpack.c.l.b16 %v41
    %v144 = vunpack.c.h.b16 %v41
    %v145 = vunpack.c.l.b16 %v42
    %v146 = vunpack.c.h.b16 %v42
    %v147 = vunpack.c.l.b16 %v43
    %v148 = vunpack.c.h.b16 %v43
    %v149 = vunpack.c.l.b16 %v44
    %v150 = vunpack.c.h.b16 %v44
    %v151 = vunpack.c.l.b16 %v45
    %v152 = vunpack.c.h.b16 %v45
    %v153 = vunpack.c.l.b16 %v46
    %v154 = vunpack.c.h.b16 %v46
    %v155 = vunpack.c.l.b16 %v47
    %v156 = vunpack.c.h.b16 %v47
    %v157 = vunpack.c.l.b16 %v48
    %v158 = vunpack.c.h.b16 %v48
    %v159 = vunpack.c.l.b16 %v49
    %v160 = vunpack.c.h.b16 %v49
    %v161 = vunpack.c.l.b16 %v50
    %v162 = vunpack.c.h.b16 %v50
    %v163 = vunpack.c.l.b16 %v51
    %v164 = vunpack.c.h.b16 %v51
    %v165 = vunpack.c.l.b16 %v52
    %v166 = vunpack.c.h.b16 %v52
    %v167 = vunpack.c.l.b16 %v53
    %v168 = vunpack.c.h.b16 %v53
    %v169 = vunpack.c.l.b16 %v54
    %v170 = vunpack.c.h.b16 %v54
    %v171 = vunpack.c.l.b16 %v55
    %v172 = vunpack.c.h.b16 %v55
    %v173 = vunpack.c.l.b16 %v56
    %v174 = vunpack.c.h.b16 %v56
    %v175 = vpack.c.b16 %v115, %v111
    %v176 = vpack.c.b16 %v116, %v112
    %v177 = vpack.c.b16 %v117, %v113
    %v178 = vpack.c.b16 %v118, %v114
    %v179 = vpack.c.b16 %v123, %v119
    %v180 = vpack.c.b16 %v124, %v120
    %v181 = vpack.c.b16 %v125, %v121
    %v182 = vpack.c.b16 %v126, %v122
    %v183 = vpack.c.b16 %v131, %v127
    %v184 = vpack.c.b16 %v132, %v128
    %v185 = vpack.c.b16 %v133, %v129
    %v186 = vpack.c.b16 %v134, %v130
    %v187 = vpack.c.b16 %v139, %v135
    %v188 = vpack.c.b16 %v140, %v136
    %v189 = vpack.c.b16 %v141, %v137
    %v190 = vpack.c.b16 %v142, %v138
    %v191 = vpack.c.b16 %v147, %v143
    %v192 = vpack.c.b16 %v148, %v144
    %v193 = vpack.c.b16 %v149, %v145
    %v194 = vpack.c.b16 %v150, %v146
    %v195 = vpack.c.b16 %v155, %v151
    %v196 = vpack.c.b16 %v156, %v152
    %v197 = vpack.c.b16 %v157, %v153
    %v198 = vpack.c.b16 %v158, %v154
    %v199 = vpack.c.b16 %v163, %v159
    %v200 = vpack.c.b16 %v164, %v160
    %v201 = vpack.c.b16 %v165, %v161
    %v202 = vpack.c.b16 %v166, %v162
    %v203 = vpack.c.b16 %v171, %v167
    %v204 = vpack.c.b16 %v172, %v168
    %v205 = vpack.c.b16 %v173, %v169
    %v206 = vpack.c.b16 %v174, %v170
    %239 = vmatprep.subr.bf16.mxu0 %v176
    %240 = vmatpush1.bf16.msra.mxu0 %v175
    %241 = vmatprep.subr.bf16.mxu0 %v180
    %242 = vmatpush1.bf16.msra.mxu0 %v179
    %243 = vmatprep.subr.bf16.mxu0 %v184
    %244 = vmatpush1.bf16.msra.mxu0 %v183
    %245 = vmatprep.subr.bf16.mxu0 %v188
    %246 = vmatpush1.bf16.msra.mxu0 %v187
    %247 = vmatprep.subr.bf16.mxu0 %v192
    %248 = vmatpush1.bf16.msra.mxu0 %v191
    %249 = vmatprep.subr.bf16.mxu0 %v196
    %250 = vmatpush1.bf16.msra.mxu0 %v195
    %251 = vmatprep.subr.bf16.mxu0 %v200
    %252 = vmatpush1.bf16.msra.mxu0 %v199
    %253 = vmatprep.subr.bf16.mxu0 %v204
    %254 = vmatpush1.bf16.msra.mxu0 %v203
    %255 = vmatprep.subr.bf16.mxu0 0
    %256 = vmatpush1.bf16.msra.mxu0 0
    %257 = vmatprep.subr.bf16.mxu0 0
    %258 = vmatpush1.bf16.msra.mxu0 0
    %259 = vmatprep.subr.bf16.mxu0 0
    %260 = vmatpush1.bf16.msra.mxu0 0
    %261 = vmatprep.subr.bf16.mxu0 0
    %262 = vmatpush1.bf16.msra.mxu0 0
    %263 = vmatprep.subr.bf16.mxu0 0
    %264 = vmatpush1.bf16.msra.mxu0 0
    %265 = vmatprep.subr.bf16.mxu0 0
    %266 = vmatpush1.bf16.msra.mxu0 0
    %267 = vmatprep.subr.bf16.mxu0 0
    %268 = vmatpush1.bf16.msra.mxu0 0
    %269 = vmatprep.subr.bf16.mxu0 0
    %270 = vmatpush1.bf16.msra.mxu0 0
    %271 = vmatprep.mubr.bf16.mxu0 0
    %272 = vmatmul.mubr.bf16.gmra.mrb[0].mxu0 %v24
    %v273 = vpop.f32.mrb[0].mxu0
    %v274 = vadd.f32 %v62, %v273
    %v275 = vpop.f32.mrb[0].mxu0
    %v276 = vadd.f32 %v66, %v275
    %v277 = vpop.f32.mrb[0].mxu0
    %v278 = vadd.f32 %v62, %v277
    %v279 = vpop.f32.mrb[0].mxu0
    %v280 = vadd.f32 %v66, %v279
    %281 = vdwg.mxu0
    %282 = vmatprep.subr.bf16.mxu0 %v178
    %283 = vmatpush1.bf16.msra.mxu0 %v177
    %284 = vmatprep.subr.bf16.mxu0 %v182
    %285 = vmatpush1.bf16.msra.mxu0 %v181
    %286 = vmatprep.subr.bf16.mxu0 %v186
    %287 = vmatpush1.bf16.msra.mxu0 %v185
    %288 = vmatprep.subr.bf16.mxu0 %v190
    %289 = vmatpush1.bf16.msra.mxu0 %v189
    %290 = vmatprep.subr.bf16.mxu0 %v194
    %291 = vmatpush1.bf16.msra.mxu0 %v193
    %292 = vmatprep.subr.bf16.mxu0 %v198
    %293 = vmatpush1.bf16.msra.mxu0 %v197
    %294 = vmatprep.subr.bf16.mxu0 %v202
    %295 = vmatpush1.bf16.msra.mxu0 %v201
    %296 = vmatprep.subr.bf16.mxu0 %v206
    %297 = vmatpush1.bf16.msra.mxu0 %v205
    %298 = vmatprep.subr.bf16.mxu0 0
    %299 = vmatpush1.bf16.msra.mxu0 0
    %300 = vmatprep.subr.bf16.mxu0 0
    %301 = vmatpush1.bf16.msra.mxu0 0
    %302 = vmatprep.subr.bf16.mxu0 0
    %303 = vmatpush1.bf16.msra.mxu0 0
    %304 = vmatprep.subr.bf16.mxu0 0
    %305 = vmatpush1.bf16.msra.mxu0 0
    %306 = vmatprep.subr.bf16.mxu0 0
    %307 = vmatpush1.bf16.msra.mxu0 0
    %308 = vmatprep.subr.bf16.mxu0 0
    %309 = vmatpush1.bf16.msra.mxu0 0
    %310 = vmatprep.subr.bf16.mxu0 0
    %311 = vmatpush1.bf16.msra.mxu0 0
    %312 = vmatprep.subr.bf16.mxu0 0
    %313 = vmatpush1.bf16.msra.mxu0 0
    %314 = vmatprep.mubr.bf16.mxu0 0
    %315 = vmatmul.mubr.bf16.gmra.mrb[0].mxu0 %v24
    %v316 = vpop.f32.mrb[0].mxu0
    %v317 = vadd.f32 %v70, %v316
    %v318 = vpop.f32.mrb[0].mxu0
    %v319 = vadd.f32 %v74, %v318
    %v320 = vpop.f32.mrb[0].mxu0
    %v321 = vadd.f32 %v70, %v320
    %v322 = vpop.f32.mrb[0].mxu0
    %v323 = vadd.f32 %v74, %v322
    %324 = vdwg.mxu0
    %v325 = vmax.f32 %v274, 0.0
    %v326 = vmax.f32 %v276, 0.0
    %v327 = vmax.f32 %v317, 0.0
    %v328 = vmax.f32 %v319, 0.0
    %v329 = vmax.f32 %v278, 0.0
    %v330 = vmax.f32 %v280, 0.0
    %v331 = vmax.f32 %v321, 0.0
    %v332 = vmax.f32 %v323, 0.0
    %v333 = vpack.c.bf16 %v329, %v325
    %v334 = vpack.c.bf16 %v330, %v326
    %v335 = vpack.c.bf16 %v331, %v327
    %v336 = vpack.c.bf16 %v332, %v328
    %v337 = vld [vmem:[%s3] sm:$0xf]
    %v338 = vld [vmem:[%s3 + $0x4] sm:$0xf]
    %v339 = vld [vmem:[%s3 + $0x8] sm:$0xf]
    %v340 = vld [vmem:[%s3 + $0xc] sm:$0xf]
    %v341 = vld [vmem:[%s3 + $0x10] sm:$0xf]
    %v342 = vld [vmem:[%s3 + $0x14] sm:$0xf]
    %v343 = vld [vmem:[%s3 + $0x18] sm:$0xf]
    %v344 = vld [vmem:[%s3 + $0x1c] sm:$0xf]
    %v345 = vld [vmem:[%s3 + $0x20] sm:$0xf]
    %v346 = vld [vmem:[%s3 + $0x24] sm:$0xf]
    %v347 = vld [vmem:[%s3 + $0x28] sm:$0xf]
    %v348 = vld [vmem:[%s3 + $0x2c] sm:$0xf]
    %v349 = vld [vmem:[%s3 + $0x30] sm:$0xf]
    %v350 = vld [vmem:[%s3 + $0x34] sm:$0xf]
    %v351 = vld [vmem:[%s3 + $0x38] sm:$0xf]
    %v352 = vld [vmem:[%s3 + $0x3c] sm:$0xf]
    %v353 = vld [vmem:[%s3 + $0x40] sm:$0xf]
    %v354 = vld [vmem:[%s3 + $0x44] sm:$0xf]
    %v355 = vld [vmem:[%s3 + $0x48] sm:$0xf]
    %v356 = vld [vmem:[%s3 + $0x4c] sm:$0xf]
    %v357 = vld [vmem:[%s3 + $0x50] sm:$0xf]
    %v358 = vld [vmem:[%s3 + $0x54] sm:$0xf]
    %v359 = vld [vmem:[%s3 + $0x58] sm:$0xf]
    %v360 = vld [vmem:[%s3 + $0x5c] sm:$0xf]
    %v361 = vld [vmem:[%s3 + $0x60] sm:$0xf]
    %v362 = vld [vmem:[%s3 + $0x64] sm:$0xf]
    %v363 = vld [vmem:[%s3 + $0x68] sm:$0xf]
    %v364 = vld [vmem:[%s3 + $0x6c] sm:$0xf]
    %v365 = vld [vmem:[%s3 + $0x70] sm:$0xf]
    %v366 = vld [vmem:[%s3 + $0x74] sm:$0xf]
    %v367 = vld [vmem:[%s3 + $0x78] sm:$0xf]
    %v368 = vld [vmem:[%s3 + $0x7c] sm:$0xf]
    %v369 = vld [vmem:[%s3 + $0x80] sm:$0xf]
    %v370 = vld [vmem:[%s3 + $0x84] sm:$0xf]
    %v371 = vld [vmem:[%s3 + $0x88] sm:$0xf]
    %v372 = vld [vmem:[%s3 + $0x8c] sm:$0xf]
    %v373 = vld [vmem:[%s3 + $0x90] sm:$0xf]
    %v374 = vld [vmem:[%s3 + $0x94] sm:$0xf]
    %v375 = vld [vmem:[%s3 + $0x98] sm:$0xf]
    %v376 = vld [vmem:[%s3 + $0x9c] sm:$0xf]
    %v377 = vld [vmem:[%s3 + $0xa0] sm:$0xf]
    %v378 = vld [vmem:[%s3 + $0xa4] sm:$0xf]
    %v379 = vld [vmem:[%s3 + $0xa8] sm:$0xf]
    %v380 = vld [vmem:[%s3 + $0xac] sm:$0xf]
    %v381 = vld [vmem:[%s3 + $0xb0] sm:$0xf]
    %v382 = vld [vmem:[%s3 + $0xb4] sm:$0xf]
    %v383 = vld [vmem:[%s3 + $0xb8] sm:$0xf]
    %v384 = vld [vmem:[%s3 + $0xbc] sm:$0xf]
    %v385 = vld [vmem:[%s3 + $0xc0] sm:$0xf]
    %v386 = vld [vmem:[%s3 + $0xc4] sm:$0xf]
    %v387 = vld [vmem:[%s3 + $0xc8] sm:$0xf]
    %v388 = vld [vmem:[%s3 + $0xcc] sm:$0xf]
    %v389 = vld [vmem:[%s3 + $0xd0] sm:$0xf]
    %v390 = vld [vmem:[%s3 + $0xd4] sm:$0xf]
    %v391 = vld [vmem:[%s3 + $0xd8] sm:$0xf]
    %v392 = vld [vmem:[%s3 + $0xdc] sm:$0xf]
    %v393 = vld [vmem:[%s3 + $0xe0] sm:$0xf]
    %v394 = vld [vmem:[%s3 + $0xe4] sm:$0xf]
    %v395 = vld [vmem:[%s3 + $0xe8] sm:$0xf]
    %v396 = vld [vmem:[%s3 + $0xec] sm:$0xf]
    %v397 = vld [vmem:[%s3 + $0xf0] sm:$0xf]
    %v398 = vld [vmem:[%s3 + $0xf4] sm:$0xf]
    %v399 = vld [vmem:[%s3 + $0xf8] sm:$0xf]
    %v400 = vld [vmem:[%s3 + $0xfc] sm:$0xf]
    %v401 = vld [vmem:[%s4] sm:$0x1]
    %v403 = vlaneseq
    %v404 = vshrl.u32 %v403, 7
    %v405 = vsub.s32 0, %v404
    %v406 = vrot.slane %v401, %v405
    %v472 = vunpack.c.l.b16 %v337
    %v473 = vunpack.c.l.b16 %v338
    %v474 = vunpack.c.l.b16 %v339
    %v475 = vunpack.c.l.b16 %v340
    %v476 = vunpack.c.l.b16 %v341
    %v477 = vunpack.c.l.b16 %v342
    %v478 = vunpack.c.l.b16 %v343
    %v479 = vunpack.c.l.b16 %v344
    %v480 = vunpack.c.l.b16 %v345
    %v481 = vunpack.c.l.b16 %v346
    %v482 = vunpack.c.l.b16 %v347
    %v483 = vunpack.c.l.b16 %v348
    %v484 = vunpack.c.l.b16 %v349
    %v485 = vunpack.c.l.b16 %v350
    %v486 = vunpack.c.l.b16 %v351
    %v487 = vunpack.c.l.b16 %v352
    %v488 = vunpack.c.l.b16 %v353
    %v489 = vunpack.c.l.b16 %v354
    %v490 = vunpack.c.l.b16 %v355
    %v491 = vunpack.c.l.b16 %v356
    %v492 = vunpack.c.l.b16 %v357
    %v493 = vunpack.c.l.b16 %v358
    %v494 = vunpack.c.l.b16 %v359
    %v495 = vunpack.c.l.b16 %v360
    %v496 = vunpack.c.l.b16 %v361
    %v497 = vunpack.c.l.b16 %v362
    %v498 = vunpack.c.l.b16 %v363
    %v499 = vunpack.c.l.b16 %v364
    %v500 = vunpack.c.l.b16 %v365
    %v501 = vunpack.c.l.b16 %v366
    %v502 = vunpack.c.l.b16 %v367
    %v503 = vunpack.c.l.b16 %v368
    %v504 = vunpack.c.l.b16 %v369
    %v505 = vunpack.c.l.b16 %v370
    %v506 = vunpack.c.l.b16 %v371
    %v507 = vunpack.c.l.b16 %v372
    %v508 = vunpack.c.l.b16 %v373
    %v509 = vunpack.c.l.b16 %v374
    %v510 = vunpack.c.l.b16 %v375
    %v511 = vunpack.c.l.b16 %v376
    %v512 = vunpack.c.l.b16 %v377
    %v513 = vunpack.c.l.b16 %v378
    %v514 = vunpack.c.l.b16 %v379
    %v515 = vunpack.c.l.b16 %v380
    %v516 = vunpack.c.l.b16 %v381
    %v517 = vunpack.c.l.b16 %v382
    %v518 = vunpack.c.l.b16 %v383
    %v519 = vunpack.c.l.b16 %v384
    %v520 = vunpack.c.l.b16 %v385
    %v521 = vunpack.c.l.b16 %v386
    %v522 = vunpack.c.l.b16 %v387
    %v523 = vunpack.c.l.b16 %v388
    %v524 = vunpack.c.l.b16 %v389
    %v525 = vunpack.c.l.b16 %v390
    %v526 = vunpack.c.l.b16 %v391
    %v527 = vunpack.c.l.b16 %v392
    %v528 = vunpack.c.l.b16 %v393
    %v529 = vunpack.c.l.b16 %v394
    %v530 = vunpack.c.l.b16 %v395
    %v531 = vunpack.c.l.b16 %v396
    %v532 = vunpack.c.l.b16 %v397
    %v533 = vunpack.c.l.b16 %v398
    %v534 = vunpack.c.l.b16 %v399
    %v535 = vunpack.c.l.b16 %v400
    %v536 = vpack.c.b16 %v473, %v472
    %v537 = vpack.c.b16 %v475, %v474
    %v538 = vpack.c.b16 %v477, %v476
    %v539 = vpack.c.b16 %v479, %v478
    %v540 = vpack.c.b16 %v481, %v480
    %v541 = vpack.c.b16 %v483, %v482
    %v542 = vpack.c.b16 %v485, %v484
    %v543 = vpack.c.b16 %v487, %v486
    %v544 = vpack.c.b16 %v489, %v488
    %v545 = vpack.c.b16 %v491, %v490
    %v546 = vpack.c.b16 %v493, %v492
    %v547 = vpack.c.b16 %v495, %v494
    %v548 = vpack.c.b16 %v497, %v496
    %v549 = vpack.c.b16 %v499, %v498
    %v550 = vpack.c.b16 %v501, %v500
    %v551 = vpack.c.b16 %v503, %v502
    %v552 = vpack.c.b16 %v505, %v504
    %v553 = vpack.c.b16 %v507, %v506
    %v554 = vpack.c.b16 %v509, %v508
    %v555 = vpack.c.b16 %v511, %v510
    %v556 = vpack.c.b16 %v513, %v512
    %v557 = vpack.c.b16 %v515, %v514
    %v558 = vpack.c.b16 %v517, %v516
    %v559 = vpack.c.b16 %v519, %v518
    %v560 = vpack.c.b16 %v521, %v520
    %v561 = vpack.c.b16 %v523, %v522
    %v562 = vpack.c.b16 %v525, %v524
    %v563 = vpack.c.b16 %v527, %v526
    %v564 = vpack.c.b16 %v529, %v528
    %v565 = vpack.c.b16 %v531, %v530
    %v566 = vpack.c.b16 %v533, %v532
    %v567 = vpack.c.b16 %v535, %v534
    %600 = vmatprep.subr.bf16.mxu0 0
    %601 = vmatpush1.bf16.msra.mxu0 %v536
    %602 = vmatprep.subr.bf16.mxu0 0
    %603 = vmatpush1.bf16.msra.mxu0 %v537
    %604 = vmatprep.subr.bf16.mxu0 0
    %605 = vmatpush1.bf16.msra.mxu0 %v538
    %606 = vmatprep.subr.bf16.mxu0 0
    %607 = vmatpush1.bf16.msra.mxu0 %v539
    %608 = vmatprep.subr.bf16.mxu0 0
    %609 = vmatpush1.bf16.msra.mxu0 %v540
    %610 = vmatprep.subr.bf16.mxu0 0
    %611 = vmatpush1.bf16.msra.mxu0 %v541
    %612 = vmatprep.subr.bf16.mxu0 0
    %613 = vmatpush1.bf16.msra.mxu0 %v542
    %614 = vmatprep.subr.bf16.mxu0 0
    %615 = vmatpush1.bf16.msra.mxu0 %v543
    %616 = vmatprep.subr.bf16.mxu0 0
    %617 = vmatpush1.bf16.msra.mxu0 %v544
    %618 = vmatprep.subr.bf16.mxu0 0
    %619 = vmatpush1.bf16.msra.mxu0 %v545
    %620 = vmatprep.subr.bf16.mxu0 0
    %621 = vmatpush1.bf16.msra.mxu0 %v546
    %622 = vmatprep.subr.bf16.mxu0 0
    %623 = vmatpush1.bf16.msra.mxu0 %v547
    %624 = vmatprep.subr.bf16.mxu0 0
    %625 = vmatpush1.bf16.msra.mxu0 %v548
    %626 = vmatprep.subr.bf16.mxu0 0
    %627 = vmatpush1.bf16.msra.mxu0 %v549
    %628 = vmatprep.subr.bf16.mxu0 0
    %629 = vmatpush1.bf16.msra.mxu0 %v550
    %630 = vmatprep.subr.bf16.mxu0 0
    %631 = vmatpush1.bf16.msra.mxu0 %v551
    %632 = vmatprep.mubr.bf16.mxu0 %v334
    %633 = vmatmul.mubr.bf16.gmra.mrb[0].mxu0 %v333
    %v634 = vpop.f32.mrb[0].mxu0
    %v635 = vadd.f32 %v406, %v634
    %v636 = vpop.f32.mrb[0].mxu0
    %v637 = vpop.f32.mrb[0].mxu0
    %v638 = vadd.f32 %v406, %v637
    %v639 = vpop.f32.mrb[0].mxu0
    %640 = vdwg.mxu0
    %641 = vmatprep.subr.bf16.mxu0 0
    %642 = vmatpush1.bf16.msra.mxu0 %v552
    %643 = vmatprep.subr.bf16.mxu0 0
    %644 = vmatpush1.bf16.msra.mxu0 %v553
    %645 = vmatprep.subr.bf16.mxu0 0
    %646 = vmatpush1.bf16.msra.mxu0 %v554
    %647 = vmatprep.subr.bf16.mxu0 0
    %648 = vmatpush1.bf16.msra.mxu0 %v555
    %649 = vmatprep.subr.bf16.mxu0 0
    %650 = vmatpush1.bf16.msra.mxu0 %v556
    %651 = vmatprep.subr.bf16.mxu0 0
    %652 = vmatpush1.bf16.msra.mxu0 %v557
    %653 = vmatprep.subr.bf16.mxu0 0
    %654 = vmatpush1.bf16.msra.mxu0 %v558
    %655 = vmatprep.subr.bf16.mxu0 0
    %656 = vmatpush1.bf16.msra.mxu0 %v559
    %657 = vmatprep.subr.bf16.mxu0 0
    %658 = vmatpush1.bf16.msra.mxu0 %v560
    %659 = vmatprep.subr.bf16.mxu0 0
    %660 = vmatpush1.bf16.msra.mxu0 %v561
    %661 = vmatprep.subr.bf16.mxu0 0
    %662 = vmatpush1.bf16.msra.mxu0 %v562
    %663 = vmatprep.subr.bf16.mxu0 0
    %664 = vmatpush1.bf16.msra.mxu0 %v563
    %665 = vmatprep.subr.bf16.mxu0 0
    %666 = vmatpush1.bf16.msra.mxu0 %v564
    %667 = vmatprep.subr.bf16.mxu0 0
    %668 = vmatpush1.bf16.msra.mxu0 %v565
    %669 = vmatprep.subr.bf16.mxu0 0
    %670 = vmatpush1.bf16.msra.mxu0 %v566
    %671 = vmatprep.subr.bf16.mxu0 0
    %672 = vmatpush1.bf16.msra.mxu0 %v567
    %673 = vmatprep.mubr.bf16.mxu0 %v336
    %674 = vmatmul.mubr.bf16.gmra.mrb[0].mxu0 %v335
    %v675 = vpop.f32.mrb[0].mxu0
    %v676 = vadd.f32 %v635, %v675
    %v677 = vpop.f32.mrb[0].mxu0
    %v678 = vpop.f32.mrb[0].mxu0
    %v679 = vadd.f32 %v638, %v678
    %v680 = vpop.f32.mrb[0].mxu0
    %681 = vdwg.mxu0
    %682 = vst [vmem:[#allocation2] sm:$0xff] %v676
    %683 = vst [vmem:[#allocation2 + $0x8] sm:$0xff] %v679
    // Predicated region
    $region22: #{feed_forward.1} parent=1 // pred_check
      _
    $region23: #{feed_forward.1} parent=1 // pred_check_branch
      %685 = sbr.rel (0) target = $region25
    $region24: #{feed_forward.1} parent=1 // pred_region
      %s687 = ssub.s32 256, 256
      %688 = vsyncadd [#allocation3], %s687
      %s689 = sshll.u32 [#allocation2], 4
      %s690 = int_to_ptr.vmem [resolvable:$true] %s689
      %695 = dma.vmem_to_hbm [thread:$0]  %s690, 256, %s5, [#allocation3], 128, 128, 8
    $region25: #{feed_forward.1} parent=1 // pred_fallthru
      _
    // Predicated region
    $region26: #{feed_forward.1} parent=1 // pred_check
      _
    $region27: #{feed_forward.1} parent=1 // pred_check_branch
      %697 = sbr.rel (0) target = $region29
    $region28: #{feed_forward.1} parent=1 // pred_region
      %698 = dma.done [#allocation3], 256
    $region29: #{feed_forward.1} parent=1 // pred_fallthru
      _
    %699 = vsyncpa [#allocation3], 1

</llo_original>
